<compile_context>
chip_gen: v6e
topology: v6e:2x2x1
jax: 0.10.0
libtpu: 0.0.40
codegen_flags: <defaults>
</compile_context>

<pallas_src>
import jax
import jax.numpy as jnp
from jax.experimental import pallas as pl
from jax.experimental.pallas import tpu as pltpu

BN_EPS = 1e-5


# ----------------------------------------------------------------------------
# Helpers
# ----------------------------------------------------------------------------
def fold_bn(gamma, beta, mean, var):
    """Inference BN folded into a per-channel (scale, bias)."""
    scale = gamma / jnp.sqrt(var + BN_EPS)
    bias = beta - mean * scale
    return scale, bias


def _pick_tm(m, cap=512):
    """Largest row tile (multiple of 8, <= cap) dividing m; else a single full block."""
    for tm in (cap, 256, 128, 64, 32, 16, 8):
        if tm <= m and m % tm == 0:
            return tm
    return m


def _cparams():
    return pltpu.CompilerParams(
        dimension_semantics=("parallel",),
        vmem_limit_bytes=48 * 1024 * 1024,
    )


# ----------------------------------------------------------------------------
# Kernel 1: y = relu(x @ w + bias)                 (conv1 + folded bn1 + ReLU)
# ----------------------------------------------------------------------------
def _mm_bias_relu_kernel(x_ref, w_ref, b_ref, o_ref):
    acc = jnp.dot(x_ref[...], w_ref[...], preferred_element_type=jnp.float32)
    o_ref[...] = jnp.maximum(acc + b_ref[...], 0.0).astype(o_ref.dtype)


def matmul_bias_relu(x, w, bias, *, out_dtype):
    m, k = x.shape
    n = w.shape[1]
    bias = bias.reshape(1, n).astype(jnp.float32)
    tm = _pick_tm(m)
    cost = pl.CostEstimate(
        flops=2 * m * k * n,
        transcendentals=0,
        bytes_accessed=x.size * x.dtype.itemsize + w.size * w.dtype.itemsize
        + m * n * jnp.dtype(out_dtype).itemsize,
    )
    return pl.pallas_call(
        _mm_bias_relu_kernel,
        out_shape=jax.ShapeDtypeStruct((m, n), out_dtype),
        grid_spec=pltpu.PrefetchScalarGridSpec(
            num_scalar_prefetch=0,
            grid=(m // tm,),
            in_specs=[
                pl.BlockSpec((tm, k), lambda i: (i, 0)),
                pl.BlockSpec((k, n), lambda i: (0, 0)),
                pl.BlockSpec((1, n), lambda i: (0, 0)),
            ],
            out_specs=pl.BlockSpec((tm, n), lambda i: (i, 0)),
        ),
        compiler_params=_cparams(),
        cost_estimate=cost,
    )(x, w, bias)


# ----------------------------------------------------------------------------
# Kernel 3a: y = relu(x @ w3 + xs @ wd + bias)   (conv3+bn3 + downsample+bn + add + ReLU)
# ----------------------------------------------------------------------------
def _mm_dual_bias_relu_kernel(x_ref, r_ref, w_ref, wr_ref, b_ref, o_ref):
    acc = jnp.dot(x_ref[...], w_ref[...], preferred_element_type=jnp.float32)
    acc = acc + jnp.dot(r_ref[...], wr_ref[...], preferred_element_type=jnp.float32)
    o_ref[...] = jnp.maximum(acc + b_ref[...], 0.0).astype(o_ref.dtype)


def matmul_dual_bias_relu(x, w, r, wr, bias, *, out_dtype):
    m, k = x.shape
    kr = r.shape[1]
    n = w.shape[1]
    bias = bias.reshape(1, n).astype(jnp.float32)
    tm = _pick_tm(m)
    cost = pl.CostEstimate(
        flops=2 * m * n * (k + kr),
        transcendentals=0,
        bytes_accessed=(x.size + r.size + w.size + wr.size) * 2
        + m * n * jnp.dtype(out_dtype).itemsize,
    )
    return pl.pallas_call(
        _mm_dual_bias_relu_kernel,
        out_shape=jax.ShapeDtypeStruct((m, n), out_dtype),
        grid_spec=pltpu.PrefetchScalarGridSpec(
            num_scalar_prefetch=0,
            grid=(m // tm,),
            in_specs=[
                pl.BlockSpec((tm, k), lambda i: (i, 0)),
                pl.BlockSpec((tm, kr), lambda i: (i, 0)),
                pl.BlockSpec((k, n), lambda i: (0, 0)),
                pl.BlockSpec((kr, n), lambda i: (0, 0)),
                pl.BlockSpec((1, n), lambda i: (0, 0)),
            ],
            out_specs=pl.BlockSpec((tm, n), lambda i: (i, 0)),
        ),
        compiler_params=_cparams(),
        cost_estimate=cost,
    )(x, r, w, wr, bias)


# ----------------------------------------------------------------------------
# Kernel 3b: y = relu(x @ w3 + residual + bias)  (conv3+bn3 + identity residual + ReLU)
# ----------------------------------------------------------------------------
def _mm_res_bias_relu_kernel(x_ref, res_ref, w_ref, b_ref, o_ref):
    acc = jnp.dot(x_ref[...], w_ref[...], preferred_element_type=jnp.float32)
    acc = acc + res_ref[...].astype(jnp.float32)
    o_ref[...] = jnp.maximum(acc + b_ref[...], 0.0).astype(o_ref.dtype)


def matmul_res_bias_relu(x, w, res, bias, *, out_dtype):
    m, k = x.shape
    n = w.shape[1]
    bias = bias.reshape(1, n).astype(jnp.float32)
    tm = _pick_tm(m)
    cost = pl.CostEstimate(
        flops=2 * m * k * n,
        transcendentals=0,
        bytes_accessed=(x.size + res.size + w.size) * 2
        + m * n * jnp.dtype(out_dtype).itemsize,
    )
    return pl.pallas_call(
        _mm_res_bias_relu_kernel,
        out_shape=jax.ShapeDtypeStruct((m, n), out_dtype),
        grid_spec=pltpu.PrefetchScalarGridSpec(
            num_scalar_prefetch=0,
            grid=(m // tm,),
            in_specs=[
                pl.BlockSpec((tm, k), lambda i: (i, 0)),
                pl.BlockSpec((tm, n), lambda i: (i, 0)),
                pl.BlockSpec((k, n), lambda i: (0, 0)),
                pl.BlockSpec((1, n), lambda i: (0, 0)),
            ],
            out_specs=pl.BlockSpec((tm, n), lambda i: (i, 0)),
        ),
        compiler_params=_cparams(),
        cost_estimate=cost,
    )(x, res, w, bias)


# ----------------------------------------------------------------------------
# Kernel 2: conv2 (3x3, stride) + bn2 + ReLU, one spatial frame per grid step.
# The 9 taps are accumulated in f32 directly from VMEM windows (no HBM im2col).
# stride==2 inputs arrive as 4 spatial phases so all window reads are unit-stride.
# ----------------------------------------------------------------------------
def _make_conv2_kernel(stride, ho, wo, n_src):
    def kernel(*refs):
        src_refs = refs[:n_src]
        w2_ref, b2_ref, o_ref = refs[n_src], refs[n_src + 1], refs[n_src + 2]
        cout = w2_ref.shape[-1]

        def row_body(i, carry):
            acc = jnp.zeros((wo, cout), jnp.float32)
            for kh in range(3):
                for kw in range(3):
                    if stride == 1:
                        src, r, c = src_refs[0], i + kh, kw
                    else:  # stride == 2: phase (kh%2, kw%2), offsets kh//2, kw//2
                        src = src_refs[(kh % 2) * 2 + (kw % 2)]
                        r, c = i + kh // 2, kw // 2
                    win = src[0, r, c:c + wo, :]                     # (wo, cin) bf16
                    acc = acc + jnp.dot(win, w2_ref[kh * 3 + kw],
                                        preferred_element_type=jnp.float32)
            y = jnp.maximum(acc + b2_ref[...], 0.0)
            o_ref[0, i, :, :] = y.astype(o_ref.dtype)
            return carry

        jax.lax.fori_loop(0, ho, row_body, 0)

    return kernel


def conv2_3x3(srcs, w2_taps, bias, *, stride):
    nt, hs, ws, cin = srcs[0].shape
    cout = w2_taps.shape[-1]
    if stride == 1:
        ho, wo = hs - 2, ws - 2
    else:
        ho, wo = hs - 1, ws - 1
    bias = bias.reshape(1, cout).astype(jnp.float32)
    kernel = _make_conv2_kernel(stride, ho, wo, len(srcs))
    src_spec = pl.BlockSpec((1, hs, ws, cin), lambda f: (f, 0, 0, 0))
    in_specs = [src_spec] * len(srcs) + [
        pl.BlockSpec((9, cin, cout), lambda f: (0, 0, 0)),
        pl.BlockSpec((1, cout), lambda f: (0, 0)),
    ]
    cost = pl.CostEstimate(
        flops=2 * nt * ho * wo * 9 * cin * cout,
        transcendentals=0,
        bytes_accessed=sum(s.size for s in srcs) * 2 + w2_taps.size * 2
        + nt * ho * wo * cout * 2,
    )
    return pl.pallas_call(
        kernel,
        out_shape=jax.ShapeDtypeStruct((nt, ho, wo, cout), jnp.bfloat16),
        grid_spec=pltpu.PrefetchScalarGridSpec(
            num_scalar_prefetch=0,
            grid=(nt,),
            in_specs=in_specs,
            out_specs=pl.BlockSpec((1, ho, wo, cout), lambda f: (f, 0, 0, 0)),
        ),
        compiler_params=_cparams(),
        cost_estimate=cost,
    )(*srcs, w2_taps, bias)


# ----------------------------------------------------------------------------
# Bottleneck3D forward
# ----------------------------------------------------------------------------
def bottleneck3d_forward_nhwc(x_nthwc, p):
    """Channels-last forward.  x: (N, T, H, W, C) f32.  Returns (N, T, Ho, Wo, 4*planes) f32."""
    n, t, h, w, c = x_nthwc.shape
    nt = n * t
    s = p["stride"]
    planes = p["w1"].shape[1]
    cout = p["w3"].shape[1]

    xb = x_nthwc.reshape(nt, h, w, c).astype(jnp.bfloat16)

    # conv1 (1x1x1) + bn1 + relu
    out1 = matmul_bias_relu(xb.reshape(nt * h * w, c), p["w1"], p["b1"],
                            out_dtype=jnp.bfloat16)
    out1 = out1.reshape(nt, h, w, planes)

    # conv2 (1x3x3, stride) + bn2 + relu (taps accumulated inside the kernel)
    out1p = jnp.pad(out1, ((0, 0), (1, 1), (1, 1), (0, 0)))
    if s == 1:
        srcs = (out1p,)
    else:
        assert s == 2 and h % 2 == 0 and w % 2 == 0
        srcs = tuple(out1p[:, a::2, b::2, :] for a in range(2) for b in range(2))
    out2 = conv2_3x3(srcs, p["w2"], p["b2"], stride=s)
    ho, wo = out2.shape[1], out2.shape[2]

    # conv3 (1x1x1) + bn3 + (downsample conv+bn | identity) + add + relu, one kernel
    out2r = out2.reshape(nt * ho * wo, planes)
    if p["wd"] is not None:
        xs = xb if s == 1 else xb[:, ::s, ::s, :]
        out = matmul_dual_bias_relu(out2r, p["w3"],
                                    xs.reshape(nt * ho * wo, c), p["wd"],
                                    p["b3"], out_dtype=jnp.float32)
    else:
        out = matmul_res_bias_relu(out2r, p["w3"],
                                   xb.reshape(nt * ho * wo, c),
                                   p["b3"], out_dtype=jnp.float32)
    return out.reshape(n, t, ho, wo, cout)


def bottleneck3d_forward(x_ncthw, p):
    # NCDHW module interface.  When chaining blocks, keep tensors channels-last and call
    # bottleneck3d_forward_nhwc directly (transpose only at network boundaries).
    x = jnp.transpose(x_ncthw, (0, 2, 3, 4, 1))
    out = bottleneck3d_forward_nhwc(x, p)
    return jnp.transpose(out, (0, 4, 1, 2, 3))


# ----------------------------------------------------------------------------
# Pure-JAX reference (lax convs, f32) for the correctness check.
# ----------------------------------------------------------------------------
def reference_forward(x_ncthw, p):
    n, c, t, h, w = x_ncthw.shape
    x = jnp.transpose(x_ncthw, (0, 2, 3, 4, 1)).reshape(n * t, h, w, c)
    s = p["stride"]

    def conv(v, w_oihw, stride, pad):
        return jax.lax.conv_general_dilated(
            v, jnp.transpose(w_oihw, (2, 3, 1, 0)), (stride, stride),
            [(pad, pad), (pad, pad)],
            dimension_numbers=("NHWC", "HWIO", "NHWC"))

    def bn(v, params):
        gamma, beta, mean, var = params
        return (v - mean) / jnp.sqrt(var + BN_EPS) * gamma + beta

    out = jax.nn.relu(bn(conv(x, p["w1_oihw"], 1, 0), p["bn1"]))
    out = jax.nn.relu(bn(conv(out, p["w2_oihw"], s, 1), p["bn2"]))
    out = bn(conv(out, p["w3_oihw"], 1, 0), p["bn3"])
    if p["wd_oihw"] is not None:
        res = bn(conv(x, p["wd_oihw"], s, 0), p["bnd"])
    else:
        res = x
    out = jax.nn.relu(out + res)
    ho, wo, cout = out.shape[1], out.shape[2], out.shape[3]
    return jnp.transpose(out.reshape(n, t, ho, wo, cout), (0, 4, 1, 2, 3))


# ----------------------------------------------------------------------------
# Deterministic parameter construction (synthetic, no checkpoint).
# ----------------------------------------------------------------------------
def make_params(key, inplanes, planes, stride, downsample):
    cout = planes * 4
    ks = jax.random.split(key, 8)

    def bn_params(k, ch):
        k1, k2, k3, k4 = jax.random.split(k, 4)
        gamma = 1.0 + 0.1 * jax.random.normal(k1, (ch,), jnp.float32)
        beta = 0.1 * jax.random.normal(k2, (ch,), jnp.float32)
        mean = 0.1 * jax.random.normal(k3, (ch,), jnp.float32)
        var = 0.5 + 0.5 * jnp.abs(jax.random.normal(k4, (ch,), jnp.float32))
        return gamma, beta, mean, var

    w1_oihw = 0.1 * jax.random.normal(ks[0], (planes, inplanes, 1, 1), jnp.float32)
    w2_oihw = 0.1 * jax.random.normal(ks[1], (planes, planes, 3, 3), jnp.float32)
    w3_oihw = 0.1 * jax.random.normal(ks[2], (cout, planes, 1, 1), jnp.float32)
    bn1, bn2, bn3 = bn_params(ks[4], planes), bn_params(ks[5], planes), bn_params(ks[6], cout)

    s1, b1 = fold_bn(*bn1)
    s2, b2 = fold_bn(*bn2)
    s3, b3 = fold_bn(*bn3)

    p = {
        "stride": stride,
        # matmul-layout weights, BN scale folded into the output columns, bf16
        "w1": (w1_oihw[:, :, 0, 0].T * s1[None, :]).astype(jnp.bfloat16),
        "w2": jnp.stack([w2_oihw[:, :, kh, kw].T * s2[None, :]
                         for kh in range(3) for kw in range(3)], 0).astype(jnp.bfloat16),
        "w3": (w3_oihw[:, :, 0, 0].T * s3[None, :]).astype(jnp.bfloat16),
        "b1": b1, "b2": b2,
        # original-layout weights / BN stats for the reference path
        "w1_oihw": w1_oihw, "w2_oihw": w2_oihw, "w3_oihw": w3_oihw,
        "bn1": bn1, "bn2": bn2, "bn3": bn3,
    }
    if downsample:
        wd_oihw = 0.1 * jax.random.normal(ks[3], (cout, inplanes, 1, 1), jnp.float32)
        bnd = bn_params(ks[7], cout)
        sd, bd = fold_bn(*bnd)
        p["wd"] = (wd_oihw[:, :, 0, 0].T * sd[None, :]).astype(jnp.bfloat16)
        p["b3"] = b3 + bd          # combined per-channel bias of the fused conv3+downsample
        p["wd_oihw"] = wd_oihw
        p["bnd"] = bnd
    else:
        p["wd"] = None
        p["b3"] = b3
        p["wd_oihw"] = None
    return p


def _check(out, ref):
    assert out.shape == ref.shape, (out.shape, ref.shape)
    err = float(jnp.max(jnp.abs(out.astype(jnp.float32) - ref)))
    scale = float(jnp.max(jnp.abs(ref))) + 1e-6
    assert err <= 0.05 * scale + 0.05, (err, scale)


if __name__ == "__main__":
    key = jax.random.PRNGKey(0)
    kx1, kx2, kp1, kp2 = jax.random.split(key, 4)

    # Config 1: stride-2 bottleneck with a downsample branch (first block of a stage).
    n, t, h, w = 2, 2, 16, 16
    inplanes, planes, stride = 64, 32, 2
    p1 = make_params(kp1, inplanes, planes, stride, downsample=True)
    x1 = jax.random.normal(kx1, (n, inplanes, t, h, w), jnp.float32)  # NCDHW
    out1 = jax.block_until_ready(bottleneck3d_forward(x1, p1))
    ref1 = jax.block_until_ready(reference_forward(x1, p1))
    _check(out1, ref1)

    # Config 2: stride-1 bottleneck with identity residual (inplanes == 4*planes).
    p2 = make_params(kp2, 4 * planes, planes, 1, downsample=False)
    x2 = jax.random.normal(kx2, (n, 4 * planes, t, h, w), jnp.float32)  # NCDHW
    out2 = jax.block_until_ready(bottleneck3d_forward(x2, p2))
    ref2 = jax.block_until_ready(reference_forward(x2, p2))
    _check(out2, ref2)

    print("KERNEL_OK")
</pallas_src>

<mosaic_0001>
module attributes {stable_mosaic.version = 11 : i64} {
  func.func @_mm_bias_relu_kernel(%arg0: i32, %arg1: memref<512x64xbf16, #tpu.memory_space<vmem>>, %arg2: memref<64x32xbf16, #tpu.memory_space<vmem>>, %arg3: memref<1x32xf32, #tpu.memory_space<vmem>>, %arg4: memref<512x32xbf16, #tpu.memory_space<vmem>>) attributes {dimension_semantics = [#tpu.dimension_semantics<parallel>], iteration_bounds = array<i64: 2>, scalar_prefetch = 0 : i64, scratch_operands = 0 : i64, tpu.core_type = #tpu.core_type<tc>, window_params = [{transform_indices = @transform_0, window_bounds = array<i64: 512, 64>}, {pipeline_mode = #tpu.pipeline_mode<synchronous>, transform_indices = @transform_1, window_bounds = array<i64: 64, 32>}, {pipeline_mode = #tpu.pipeline_mode<synchronous>, transform_indices = @transform_2, window_bounds = array<i64: 1, 32>}, {transform_indices = @transform_3, window_bounds = array<i64: 512, 32>}]} {
    %c0 = arith.constant 0 : index
    %c0_0 = arith.constant 0 : index
    %0 = vector.load %arg1[%c0, %c0_0] : memref<512x64xbf16, #tpu.memory_space<vmem>>, vector<512x64xbf16>
    %c0_1 = arith.constant 0 : index
    %c0_2 = arith.constant 0 : index
    %1 = vector.load %arg2[%c0_1, %c0_2] : memref<64x32xbf16, #tpu.memory_space<vmem>>, vector<64x32xbf16>
    %cst = arith.constant dense<0.000000e+00> : vector<512x32xf32>
    %2 = tpu.matmul %0, %1, %cst {dimension_numbers = #tpu.dot_dimension_numbers<[1], [0], [0], [1], [0, 0, 1, 1], [], []>} : vector<512x64xbf16>, vector<64x32xbf16>, vector<512x32xf32> -> vector<512x32xf32>
    %c0_3 = arith.constant 0 : index
    %c0_4 = arith.constant 0 : index
    %3 = vector.load %arg3[%c0_3, %c0_4] : memref<1x32xf32, #tpu.memory_space<vmem>>, vector<1x32xf32>
    %4 = vector.broadcast %3 : vector<1x32xf32> to vector<512x32xf32>
    %5 = arith.addf %2, %4 : vector<512x32xf32>
    %cst_5 = arith.constant 0.000000e+00 : f32
    %6 = vector.broadcast %cst_5 : f32 to vector<512x32xf32>
    %7 = arith.maximumf %5, %6 : vector<512x32xf32>
    %8 = arith.truncf %7 : vector<512x32xf32> to vector<512x32xbf16>
    %c0_6 = arith.constant 0 : index
    %c0_7 = arith.constant 0 : index
    %9 = vector.load %arg4[%c0_6, %c0_7] : memref<512x32xbf16, #tpu.memory_space<vmem>>, vector<512x32xbf16>
    tpu.vector_store %arg4[%c0_6, %c0_7], %8 {strides = array<i32>} : memref<512x32xbf16, #tpu.memory_space<vmem>>, vector<512x32xbf16>,
    return
  }
  func.func @transform_0(%arg0: i32) -> (i32, i32) {
    %c0_i32 = arith.constant 0 : i32
    %c0_i32_0 = arith.constant 0 : i32
    return %arg0, %c0_i32 : i32, i32
  }
  func.func @transform_1(%arg0: i32) -> (i32, i32) {
    %c0_i32 = arith.constant 0 : i32
    %c0_i32_0 = arith.constant 0 : i32
    %c0_i32_1 = arith.constant 0 : i32
    return %c0_i32, %c0_i32_0 : i32, i32
  }
  func.func @transform_2(%arg0: i32) -> (i32, i32) {
    %c0_i32 = arith.constant 0 : i32
    %c0_i32_0 = arith.constant 0 : i32
    %c0_i32_1 = arith.constant 0 : i32
    return %c0_i32, %c0_i32_0 : i32, i32
  }
  func.func @transform_3(%arg0: i32) -> (i32, i32) {
    %c0_i32 = arith.constant 0 : i32
    %c0_i32_0 = arith.constant 0 : i32
    return %arg0, %c0_i32 : i32, i32
  }
}

</mosaic_0001>

<llo_original>
// kernel: tpu_custom_call.1
$region0: #{tpu_custom_call.1}
  #allocation0 [shape = 'u32[]', space=smem, size = 0x4, offset = 0x4, fixed_abs, tag = 'smem constant byte address 0x4 - core index']
  #allocation1 [shape = 'u32[144,128]{1,0:T(1,128)}', space=vmem, size = 0x12000, scoped, tag = 'internal scratch']
  %s0 = inlined_call_operand.vmem [shape: bf16[1024,64], index: 0, kind: input, shape index: {}]
  %s1 = inlined_call_operand.vmem [shape: bf16[64,32], index: 1, kind: input, shape index: {}]
  %s2 = inlined_call_operand.vmem [shape: f32[1,32], index: 2, kind: input, shape index: {}]
  %s3 = inlined_call_operand.vmem [shape: bf16[1024,32], index: 3, kind: output, shape index: {}]
  %s4 = sld [smem:[#allocation0]]
  $region45: #{tpu_custom_call.1} parent=0
    _
  %s6 = ssub.s32 1, %s4
  %s7 = scalar_select 0, %s6, %s4
  loop: start=0, step=1, limit=4
  $region2: #{tpu_custom_call.1} parent=0 // loop_pre_header
    _
  $region3: #{tpu_custom_call.1} parent=0 // loop_header
    %s9 = sphi 0, %s13
    %p10 = scmp.ge.s32.totalorder %s9, 4
    %s19 = sphi 0, %s21
    %s22 = sphi 0, %s19
    %s23 = sphi 0, %s22
    %s39 = sphi 0, %s23
    %s43 = sphi 0, %s43
    %s45 = sphi 0, %s43
    %s46 = sphi 0, %s45
    %s60 = sphi 0, %s46
    %s64 = sphi 0, %s64
    %s66 = sphi 0, %s64
    %s67 = sphi 0, %s66
    %s81 = sphi 0, %s67
    %s87 = sphi 0, %s89
    %s90 = sphi 0, %s87
    %s91 = sphi 0, %s90
    %s107 = sphi 0, %s91
  $region4: #{tpu_custom_call.1} parent=0 // loop_header_branch
    %12 = sbr.rel (%p10) target = $region8
  $region5: #{tpu_custom_call.1} parent=0 // loop_body
    %s14 = ssub.s32 %s9, 1
    %s15 = ssub.s32 %s9, 2
    %s16 = sadd.s32 %s9, 1
    %s17 = ssub.s32 %s9, %s16
    %p18 = scmp.eq.s32.totalorder %s17, 0
    %s20 = sadd.s32 %s19, 1
    %s21 = scalar_select %p18, %s19, %s20
    %p24 = pneg %p18
    %p25 = scmp.eq.s32.totalorder %s9, 1
    %p26 = por %p24, %p25
    %p27 = scmp.ne.s32.totalorder %s19, %s22
    %p28 = scmp.eq.s32.totalorder %s9, 0
    %p29 = por %p27, %p28
    %p30 = scmp.ne.s32.totalorder %s19, %s22
    %p31 = scmp.eq.s32.totalorder %s14, 1
    %p32 = por %p30, %p31
    %p33 = scmp.ne.s32.totalorder %s22, %s23
    %p34 = scmp.eq.s32.totalorder %s14, 0
    %p35 = por %p33, %p34
    %p36 = scmp.ne.s32.totalorder %s22, %s23
    %p37 = scmp.eq.s32.totalorder %s15, 1
    %p38 = por %p36, %p37
    %p40 = scmp.ne.s32.totalorder %s23, %s39
    %p41 = scmp.eq.s32.totalorder %s15, 0
    %p42 = por %p40, %p41
    %s44 = sadd.s32 %s43, 1
    %p47 = scmp.eq.s32.totalorder %s9, 1
    %p48 = scmp.ne.s32.totalorder %s43, %s45
    %p49 = scmp.eq.s32.totalorder %s9, 0
    %p50 = por %p48, %p49
    %p51 = scmp.ne.s32.totalorder %s43, %s45
    %p52 = scmp.eq.s32.totalorder %s14, 1
    %p53 = por %p51, %p52
    %p54 = scmp.ne.s32.totalorder %s45, %s46
    %p55 = scmp.eq.s32.totalorder %s14, 0
    %p56 = por %p54, %p55
    %p57 = scmp.ne.s32.totalorder %s45, %s46
    %p58 = scmp.eq.s32.totalorder %s15, 1
    %p59 = por %p57, %p58
    %p61 = scmp.ne.s32.totalorder %s46, %s60
    %p62 = scmp.eq.s32.totalorder %s15, 0
    %p63 = por %p61, %p62
    %s65 = sadd.s32 %s64, 1
    %p68 = scmp.eq.s32.totalorder %s9, 1
    %p69 = scmp.ne.s32.totalorder %s64, %s66
    %p70 = scmp.eq.s32.totalorder %s9, 0
    %p71 = por %p69, %p70
    %p72 = scmp.ne.s32.totalorder %s64, %s66
    %p73 = scmp.eq.s32.totalorder %s14, 1
    %p74 = por %p72, %p73
    %p75 = scmp.ne.s32.totalorder %s66, %s67
    %p76 = scmp.eq.s32.totalorder %s14, 0
    %p77 = por %p75, %p76
    %p78 = scmp.ne.s32.totalorder %s66, %s67
    %p79 = scmp.eq.s32.totalorder %s15, 1
    %p80 = por %p78, %p79
    %p82 = scmp.ne.s32.totalorder %s67, %s81
    %p83 = scmp.eq.s32.totalorder %s15, 0
    %p84 = por %p82, %p83
    %s85 = ssub.s32 %s9, %s16
    %p86 = scmp.eq.s32.totalorder %s85, 0
    %s88 = sadd.s32 %s87, 1
    %s89 = scalar_select %p86, %s87, %s88
    %p92 = pneg %p86
    %p93 = scmp.eq.s32.totalorder %s9, 1
    %p94 = por %p92, %p93
    %p95 = scmp.ne.s32.totalorder %s87, %s90
    %p96 = scmp.eq.s32.totalorder %s9, 0
    %p97 = por %p95, %p96
    %p98 = scmp.ne.s32.totalorder %s87, %s90
    %p99 = scmp.eq.s32.totalorder %s14, 1
    %p100 = por %p98, %p99
    %p101 = scmp.ne.s32.totalorder %s90, %s91
    %p102 = scmp.eq.s32.totalorder %s14, 0
    %p103 = por %p101, %p102
    %p104 = scmp.ne.s32.totalorder %s90, %s91
    %p105 = scmp.eq.s32.totalorder %s15, 1
    %p106 = por %p104, %p105
    %p108 = scmp.ne.s32.totalorder %s91, %s107
    %p109 = scmp.eq.s32.totalorder %s15, 0
    %p110 = por %p108, %p109
    %p111 = scmp.le.s32.totalorder 1, %s9
    %p112 = scmp.lt.s32.totalorder %s9, 3
    %p113 = pnand %p111, %p112
    %p114 = pneg %p113
    // Predicated region
    $region9: #{tpu_custom_call.1} parent=5 // pred_check
      _
    $region10: #{tpu_custom_call.1} parent=5 // pred_check_branch
      %116 = sbr.rel (%p113) target = $region12
    $region11: #{tpu_custom_call.1} parent=5 // pred_region
      %s117 = ssub.s32 %s9, 1
      // Predicated region
      $region13: #{tpu_custom_call.1} parent=11 // pred_check
        %p118 = pneg %p56
      $region14: #{tpu_custom_call.1} parent=11 // pred_check_branch
        %120 = sbr.rel (%p118) target = $region16
      $region15: #{tpu_custom_call.1} parent=11 // pred_region
        _
      $region16: #{tpu_custom_call.1} parent=11 // pred_fallthru
        _
      // Predicated region
      $region17: #{tpu_custom_call.1} parent=11 // pred_check
        %p121 = pneg %p77
      $region18: #{tpu_custom_call.1} parent=11 // pred_check_branch
        %123 = sbr.rel (%p121) target = $region20
      $region19: #{tpu_custom_call.1} parent=11 // pred_region
        _
      $region20: #{tpu_custom_call.1} parent=11 // pred_fallthru
        _
    $region12: #{tpu_custom_call.1} parent=5 // pred_fallthru
      _
    %p124 = scmp.lt.s32.totalorder %s9, 2
    // Predicated region
    $region21: #{tpu_custom_call.1} parent=5 // pred_check
      %p125 = pneg %p124
    $region22: #{tpu_custom_call.1} parent=5 // pred_check_branch
      %127 = sbr.rel (%p125) target = $region24
    $region23: #{tpu_custom_call.1} parent=5 // pred_region
      // Predicated region
      $region25: #{tpu_custom_call.1} parent=23 // pred_check
        %p128 = pneg %p29
      $region26: #{tpu_custom_call.1} parent=23 // pred_check_branch
        %130 = sbr.rel (%p128) target = $region28
      $region27: #{tpu_custom_call.1} parent=23 // pred_region
        %s131 = smul.u32 64, %s9
        %p132 = scmp.lt.s32.totalorder %s131, 127
        %s133 = scalar_select %p132, %s131, 127
        %s134 = smul.addr %s133, 4
        %s135 = scalar_lea.vmem %s0, %s134
        %s136 = smul.u32 64, %s9
      $region28: #{tpu_custom_call.1} parent=23 // pred_fallthru
        _
    $region24: #{tpu_custom_call.1} parent=5 // pred_fallthru
      _
    %p137 = scmp.le.s32.totalorder 1, %s9
    %p138 = scmp.lt.s32.totalorder %s9, 3
    %p139 = pnand %p137, %p138
    %p140 = pneg %p139
    // Predicated region
    $region29: #{tpu_custom_call.1} parent=5 // pred_check
      _
    $region30: #{tpu_custom_call.1} parent=5 // pred_check_branch
      %142 = sbr.rel (%p139) target = $region32
    $region31: #{tpu_custom_call.1} parent=5 // pred_region
      %s143 = ssub.s32 %s9, 1
      %s144 = smul.u32 64, %s14
      %p145 = scmp.lt.s32.totalorder %s144, 127
      %s146 = scalar_select %p145, %s144, 127
      %s147 = smul.addr %s146, 4
      %s148 = scalar_lea.vmem %s0, %s147
      %p149 = pneg %p35
      %p150 = pneg %p32
      %p151 = pneg %p56
      %p152 = pneg %p53
      %p153 = pneg %p77
      %p154 = pneg %p74
      %p155 = pneg %p103
      %p156 = pneg %p100
      %s157 = smul.u32 64, %s14
      %p158 = scmp.lt.s32.totalorder %s157, 127
      %s159 = scalar_select %p158, %s157, 127
      %s160 = smul.addr %s159, 4
      %s161 = scalar_lea.vmem %s3, %s160
      %s162 = smul.u32 64, %s14
      %p163 = scmp.lt.s32.totalorder %s162, 127
      %s164 = scalar_select %p163, %s162, 127
      %s165 = smul.addr %s164, 4
      %s166 = scalar_lea.vmem %s0, %s165
      %s167 = smul.u32 64, %s14
      %s168 = smul.u32 64, %s14
      %p169 = scmp.lt.s32.totalorder %s168, 127
      %s170 = scalar_select %p169, %s168, 127
      %s171 = smul.addr %s170, 4
      %s172 = scalar_lea.vmem %s3, %s171
      %s173 = smul.u32 64, %s14
      %v175 = vld [vmem:[%s166] sm:$0xf]
      %v176 = vld [vmem:[%s166 + $0x4] sm:$0xf]
      %v177 = vld [vmem:[%s166 + $0x8] sm:$0xf]
      %v178 = vld [vmem:[%s166 + $0xc] sm:$0xf]
      %v179 = vld [vmem:[%s166 + $0x10] sm:$0xf]
      %v180 = vld [vmem:[%s166 + $0x14] sm:$0xf]
      %v181 = vld [vmem:[%s166 + $0x18] sm:$0xf]
      %v182 = vld [vmem:[%s166 + $0x1c] sm:$0xf]
      %v183 = vld [vmem:[%s166 + $0x20] sm:$0xf]
      %v184 = vld [vmem:[%s166 + $0x24] sm:$0xf]
      %v185 = vld [vmem:[%s166 + $0x28] sm:$0xf]
      %v186 = vld [vmem:[%s166 + $0x2c] sm:$0xf]
      %v187 = vld [vmem:[%s166 + $0x30] sm:$0xf]
      %v188 = vld [vmem:[%s166 + $0x34] sm:$0xf]
      %v189 = vld [vmem:[%s166 + $0x38] sm:$0xf]
      %v190 = vld [vmem:[%s166 + $0x3c] sm:$0xf]
      %v191 = vld [vmem:[%s166 + $0x40] sm:$0xf]
      %v192 = vld [vmem:[%s166 + $0x44] sm:$0xf]
      %v193 = vld [vmem:[%s166 + $0x48] sm:$0xf]
      %v194 = vld [vmem:[%s166 + $0x4c] sm:$0xf]
      %v195 = vld [vmem:[%s166 + $0x50] sm:$0xf]
      %v196 = vld [vmem:[%s166 + $0x54] sm:$0xf]
      %v197 = vld [vmem:[%s166 + $0x58] sm:$0xf]
      %v198 = vld [vmem:[%s166 + $0x5c] sm:$0xf]
      %v199 = vld [vmem:[%s166 + $0x60] sm:$0xf]
      %v200 = vld [vmem:[%s166 + $0x64] sm:$0xf]
      %v201 = vld [vmem:[%s166 + $0x68] sm:$0xf]
      %v202 = vld [vmem:[%s166 + $0x6c] sm:$0xf]
      %v203 = vld [vmem:[%s166 + $0x70] sm:$0xf]
      %v204 = vld [vmem:[%s166 + $0x74] sm:$0xf]
      %v205 = vld [vmem:[%s166 + $0x78] sm:$0xf]
      %v206 = vld [vmem:[%s166 + $0x7c] sm:$0xf]
      %v207 = vld [vmem:[%s166 + $0x80] sm:$0xf]
      %v208 = vld [vmem:[%s166 + $0x84] sm:$0xf]
      %v209 = vld [vmem:[%s166 + $0x88] sm:$0xf]
      %v210 = vld [vmem:[%s166 + $0x8c] sm:$0xf]
      %v211 = vld [vmem:[%s166 + $0x90] sm:$0xf]
      %v212 = vld [vmem:[%s166 + $0x94] sm:$0xf]
      %v213 = vld [vmem:[%s166 + $0x98] sm:$0xf]
      %v214 = vld [vmem:[%s166 + $0x9c] sm:$0xf]
      %v215 = vld [vmem:[%s166 + $0xa0] sm:$0xf]
      %v216 = vld [vmem:[%s166 + $0xa4] sm:$0xf]
      %v217 = vld [vmem:[%s166 + $0xa8] sm:$0xf]
      %v218 = vld [vmem:[%s166 + $0xac] sm:$0xf]
      %v219 = vld [vmem:[%s166 + $0xb0] sm:$0xf]
      %v220 = vld [vmem:[%s166 + $0xb4] sm:$0xf]
      %v221 = vld [vmem:[%s166 + $0xb8] sm:$0xf]
      %v222 = vld [vmem:[%s166 + $0xbc] sm:$0xf]
      %v223 = vld [vmem:[%s166 + $0xc0] sm:$0xf]
      %v224 = vld [vmem:[%s166 + $0xc4] sm:$0xf]
      %v225 = vld [vmem:[%s166 + $0xc8] sm:$0xf]
      %v226 = vld [vmem:[%s166 + $0xcc] sm:$0xf]
      %v227 = vld [vmem:[%s166 + $0xd0] sm:$0xf]
      %v228 = vld [vmem:[%s166 + $0xd4] sm:$0xf]
      %v229 = vld [vmem:[%s166 + $0xd8] sm:$0xf]
      %v230 = vld [vmem:[%s166 + $0xdc] sm:$0xf]
      %v231 = vld [vmem:[%s166 + $0xe0] sm:$0xf]
      %v232 = vld [vmem:[%s166 + $0xe4] sm:$0xf]
      %v233 = vld [vmem:[%s166 + $0xe8] sm:$0xf]
      %v234 = vld [vmem:[%s166 + $0xec] sm:$0xf]
      %v235 = vld [vmem:[%s166 + $0xf0] sm:$0xf]
      %v236 = vld [vmem:[%s166 + $0xf4] sm:$0xf]
      %v237 = vld [vmem:[%s166 + $0xf8] sm:$0xf]
      %v238 = vld [vmem:[%s166 + $0xfc] sm:$0xf]
      %v239 = vld [vmem:[%s1] sm:$0xf]
      %v240 = vld [vmem:[%s1 + $0x4] sm:$0xf]
      %v241 = vld [vmem:[%s1 + $0x8] sm:$0xf]
      %v242 = vld [vmem:[%s1 + $0xc] sm:$0xf]
      %v243 = vld [vmem:[%s1 + $0x10] sm:$0xf]
      %v244 = vld [vmem:[%s1 + $0x14] sm:$0xf]
      %v245 = vld [vmem:[%s1 + $0x18] sm:$0xf]
      %v246 = vld [vmem:[%s1 + $0x1c] sm:$0xf]
      %v247 = vld [vmem:[%s2] sm:$0x1]
      %v249 = vlaneseq
      %v250 = vshrl.u32 %v249, 7
      %v251 = vsub.s32 0, %v250
      %v252 = vrot.slane %v247, %v251
      %v318 = vunpack.c.l.b16 %v175
      %v319 = vunpack.c.l.b16 %v176
      %v320 = vunpack.c.l.b16 %v177
      %v321 = vunpack.c.l.b16 %v178
      %v322 = vunpack.c.l.b16 %v179
      %v323 = vunpack.c.l.b16 %v180
      %v324 = vunpack.c.l.b16 %v181
      %v325 = vunpack.c.l.b16 %v182
      %v326 = vunpack.c.l.b16 %v183
      %v327 = vunpack.c.l.b16 %v184
      %v328 = vunpack.c.l.b16 %v185
      %v329 = vunpack.c.l.b16 %v186
      %v330 = vunpack.c.l.b16 %v187
      %v331 = vunpack.c.l.b16 %v188
      %v332 = vunpack.c.l.b16 %v189
      %v333 = vunpack.c.l.b16 %v190
      %v334 = vunpack.c.l.b16 %v191
      %v335 = vunpack.c.l.b16 %v192
      %v336 = vunpack.c.l.b16 %v193
      %v337 = vunpack.c.l.b16 %v194
      %v338 = vunpack.c.l.b16 %v195
      %v339 = vunpack.c.l.b16 %v196
      %v340 = vunpack.c.l.b16 %v197
      %v341 = vunpack.c.l.b16 %v198
      %v342 = vunpack.c.l.b16 %v199
      %v343 = vunpack.c.l.b16 %v200
      %v344 = vunpack.c.l.b16 %v201
      %v345 = vunpack.c.l.b16 %v202
      %v346 = vunpack.c.l.b16 %v203
      %v347 = vunpack.c.l.b16 %v204
      %v348 = vunpack.c.l.b16 %v205
      %v349 = vunpack.c.l.b16 %v206
      %v350 = vunpack.c.l.b16 %v207
      %v351 = vunpack.c.l.b16 %v208
      %v352 = vunpack.c.l.b16 %v209
      %v353 = vunpack.c.l.b16 %v210
      %v354 = vunpack.c.l.b16 %v211
      %v355 = vunpack.c.l.b16 %v212
      %v356 = vunpack.c.l.b16 %v213
      %v357 = vunpack.c.l.b16 %v214
      %v358 = vunpack.c.l.b16 %v215
      %v359 = vunpack.c.l.b16 %v216
      %v360 = vunpack.c.l.b16 %v217
      %v361 = vunpack.c.l.b16 %v218
      %v362 = vunpack.c.l.b16 %v219
      %v363 = vunpack.c.l.b16 %v220
      %v364 = vunpack.c.l.b16 %v221
      %v365 = vunpack.c.l.b16 %v222
      %v366 = vunpack.c.l.b16 %v223
      %v367 = vunpack.c.l.b16 %v224
      %v368 = vunpack.c.l.b16 %v225
      %v369 = vunpack.c.l.b16 %v226
      %v370 = vunpack.c.l.b16 %v227
      %v371 = vunpack.c.l.b16 %v228
      %v372 = vunpack.c.l.b16 %v229
      %v373 = vunpack.c.l.b16 %v230
      %v374 = vunpack.c.l.b16 %v231
      %v375 = vunpack.c.l.b16 %v232
      %v376 = vunpack.c.l.b16 %v233
      %v377 = vunpack.c.l.b16 %v234
      %v378 = vunpack.c.l.b16 %v235
      %v379 = vunpack.c.l.b16 %v236
      %v380 = vunpack.c.l.b16 %v237
      %v381 = vunpack.c.l.b16 %v238
      %v382 = vpack.c.b16 %v319, %v318
      %v383 = vpack.c.b16 %v321, %v320
      %v384 = vpack.c.b16 %v323, %v322
      %v385 = vpack.c.b16 %v325, %v324
      %v386 = vpack.c.b16 %v327, %v326
      %v387 = vpack.c.b16 %v329, %v328
      %v388 = vpack.c.b16 %v331, %v330
      %v389 = vpack.c.b16 %v333, %v332
      %v390 = vpack.c.b16 %v335, %v334
      %v391 = vpack.c.b16 %v337, %v336
      %v392 = vpack.c.b16 %v339, %v338
      %v393 = vpack.c.b16 %v341, %v340
      %v394 = vpack.c.b16 %v343, %v342
      %v395 = vpack.c.b16 %v345, %v344
      %v396 = vpack.c.b16 %v347, %v346
      %v397 = vpack.c.b16 %v349, %v348
      %v398 = vpack.c.b16 %v351, %v350
      %v399 = vpack.c.b16 %v353, %v352
      %v400 = vpack.c.b16 %v355, %v354
      %v401 = vpack.c.b16 %v357, %v356
      %v402 = vpack.c.b16 %v359, %v358
      %v403 = vpack.c.b16 %v361, %v360
      %v404 = vpack.c.b16 %v363, %v362
      %v405 = vpack.c.b16 %v365, %v364
      %v406 = vpack.c.b16 %v367, %v366
      %v407 = vpack.c.b16 %v369, %v368
      %v408 = vpack.c.b16 %v371, %v370
      %v409 = vpack.c.b16 %v373, %v372
      %v410 = vpack.c.b16 %v375, %v374
      %v411 = vpack.c.b16 %v377, %v376
      %v412 = vpack.c.b16 %v379, %v378
      %v413 = vpack.c.b16 %v381, %v380
      %v422 = vunpack.c.l.b16 %v239
      %v423 = vunpack.c.l.b16 %v240
      %v424 = vunpack.c.l.b16 %v241
      %v425 = vunpack.c.l.b16 %v242
      %v426 = vunpack.c.l.b16 %v243
      %v427 = vunpack.c.l.b16 %v244
      %v428 = vunpack.c.l.b16 %v245
      %v429 = vunpack.c.l.b16 %v246
      %v430 = vpack.c.b16 %v423, %v422
      %v431 = vpack.c.b16 %v425, %v424
      %v432 = vpack.c.b16 %v427, %v426
      %v433 = vpack.c.b16 %v429, %v428
      %vm438 = vcmask 523264
      %v440 = vsel %vm438, %v382, 0
      %v443 = vsel %vm438, %v383, 0
      %v446 = vsel %vm438, %v384, 0
      %v449 = vsel %vm438, %v385, 0
      %v452 = vsel %vm438, %v386, 0
      %v455 = vsel %vm438, %v387, 0
      %v458 = vsel %vm438, %v388, 0
      %v461 = vsel %vm438, %v389, 0
      %v464 = vsel %vm438, %v390, 0
      %v467 = vsel %vm438, %v391, 0
      %v470 = vsel %vm438, %v392, 0
      %v473 = vsel %vm438, %v393, 0
      %v476 = vsel %vm438, %v394, 0
      %v479 = vsel %vm438, %v395, 0
      %v482 = vsel %vm438, %v396, 0
      %v485 = vsel %vm438, %v397, 0
      %v488 = vsel %vm438, %v398, 0
      %v491 = vsel %vm438, %v399, 0
      %v494 = vsel %vm438, %v400, 0
      %v497 = vsel %vm438, %v401, 0
      %v500 = vsel %vm438, %v402, 0
      %v503 = vsel %vm438, %v403, 0
      %v506 = vsel %vm438, %v404, 0
      %v509 = vsel %vm438, %v405, 0
      %v512 = vsel %vm438, %v406, 0
      %v515 = vsel %vm438, %v407, 0
      %v518 = vsel %vm438, %v408, 0
      %v521 = vsel %vm438, %v409, 0
      %v524 = vsel %vm438, %v410, 0
      %v527 = vsel %vm438, %v411, 0
      %v530 = vsel %vm438, %v412, 0
      %v533 = vsel %vm438, %v413, 0
      %535 = vmatprep.subr.bf16.mxu0 0
      %536 = vmatpush1.bf16.msra.mxu0 0
      %537 = vmatprep.subr.bf16.mxu0 0
      %538 = vmatpush1.bf16.msra.mxu0 0
      %539 = vmatprep.subr.bf16.mxu0 0
      %540 = vmatpush1.bf16.msra.mxu0 0
      %541 = vmatprep.subr.bf16.mxu0 0
      %542 = vmatpush1.bf16.msra.mxu0 0
      %543 = vmatprep.subr.bf16.mxu0 0
      %544 = vmatpush1.bf16.msra.mxu0 %v433
      %545 = vmatprep.subr.bf16.mxu0 0
      %546 = vmatpush1.bf16.msra.mxu0 %v432
      %547 = vmatprep.subr.bf16.mxu0 0
      %548 = vmatpush1.bf16.msra.mxu0 %v431
      %549 = vmatprep.subr.bf16.mxu0 0
      %550 = vmatpush1.bf16.msra.mxu0 %v430
      %551 = vmatprep.subr.bf16.mxu0 0
      %552 = vmatpush2.bf16.msra.mxu0 0
      %553 = vmatprep.subr.bf16.mxu0 0
      %554 = vmatpush2.bf16.msra.mxu0 0
      %555 = vmatprep.subr.bf16.mxu0 0
      %556 = vmatpush2.bf16.msra.mxu0 0
      %557 = vmatprep.subr.bf16.mxu0 0
      %558 = vmatpush2.bf16.msra.mxu0 0
      %559 = vmatprep.subr.bf16.mxu0 0
      %560 = vmatpush2.bf16.msra.mxu0 0
      %561 = vmatprep.subr.bf16.mxu0 0
      %562 = vmatpush2.bf16.msra.mxu0 0
      %563 = vmatprep.subr.bf16.mxu0 0
      %564 = vmatpush2.bf16.msra.mxu0 0
      %565 = vmatprep.subr.bf16.mxu0 0
      %566 = vmatpush2.bf16.msra.mxu0 0
      %567 = vmatprep.mubr.bf16.mxu0 0
      %568 = vmatmul.mubr.bf16.gmra.mxu0 %v440
      %v569 = vpop.f32.mrf.mxu0
      %v570 = vadd.f32 %v252, %v569
      %v571 = vpop.f32.mrf.mxu0
      %v572 = vpop.f32.mrf.mxu0
      %v573 = vadd.f32 %v252, %v572
      %v574 = vpop.f32.mrf.mxu0
      %575 = vmatprep.mubr.bf16.mxu0 0
      %576 = vmatmul.mubr.bf16.gmra.mxu0 %v443
      %v577 = vpop.f32.mrf.mxu0
      %v578 = vadd.f32 %v252, %v577
      %v579 = vpop.f32.mrf.mxu0
      %v580 = vpop.f32.mrf.mxu0
      %v581 = vadd.f32 %v252, %v580
      %v582 = vpop.f32.mrf.mxu0
      %583 = vmatprep.mubr.bf16.mxu0 0
      %584 = vmatmul.mubr.bf16.gmra.mxu0 %v446
      %v585 = vpop.f32.mrf.mxu0
      %v586 = vadd.f32 %v252, %v585
      %v587 = vpop.f32.mrf.mxu0
      %v588 = vpop.f32.mrf.mxu0
      %v589 = vadd.f32 %v252, %v588
      %v590 = vpop.f32.mrf.mxu0
      %591 = vmatprep.mubr.bf16.mxu0 0
      %592 = vmatmul.mubr.bf16.gmra.mxu0 %v449
      %v593 = vpop.f32.mrf.mxu0
      %v594 = vadd.f32 %v252, %v593
      %v595 = vpop.f32.mrf.mxu0
      %v596 = vpop.f32.mrf.mxu0
      %v597 = vadd.f32 %v252, %v596
      %v598 = vpop.f32.mrf.mxu0
      %599 = vmatprep.mubr.bf16.mxu0 0
      %600 = vmatmul.mubr.bf16.gmra.mxu0 %v452
      %v601 = vpop.f32.mrf.mxu0
      %v602 = vadd.f32 %v252, %v601
      %v603 = vpop.f32.mrf.mxu0
      %v604 = vpop.f32.mrf.mxu0
      %v605 = vadd.f32 %v252, %v604
      %v606 = vpop.f32.mrf.mxu0
      %607 = vmatprep.mubr.bf16.mxu0 0
      %608 = vmatmul.mubr.bf16.gmra.mxu0 %v455
      %v609 = vpop.f32.mrf.mxu0
      %v610 = vadd.f32 %v252, %v609
      %v611 = vpop.f32.mrf.mxu0
      %v612 = vpop.f32.mrf.mxu0
      %v613 = vadd.f32 %v252, %v612
      %v614 = vpop.f32.mrf.mxu0
      %615 = vmatprep.mubr.bf16.mxu0 0
      %616 = vmatmul.mubr.bf16.gmra.mxu0 %v458
      %v617 = vpop.f32.mrf.mxu0
      %v618 = vadd.f32 %v252, %v617
      %v619 = vpop.f32.mrf.mxu0
      %v620 = vpop.f32.mrf.mxu0
      %v621 = vadd.f32 %v252, %v620
      %v622 = vpop.f32.mrf.mxu0
      %623 = vmatprep.mubr.bf16.mxu0 0
      %624 = vmatmul.mubr.bf16.gmra.mxu0 %v461
      %v625 = vpop.f32.mrf.mxu0
      %v626 = vadd.f32 %v252, %v625
      %v627 = vpop.f32.mrf.mxu0
      %v628 = vpop.f32.mrf.mxu0
      %v629 = vadd.f32 %v252, %v628
      %v630 = vpop.f32.mrf.mxu0
      %631 = vmatprep.mubr.bf16.mxu0 0
      %632 = vmatmul.mubr.bf16.gmra.mxu0 %v464
      %v633 = vpop.f32.mrf.mxu0
      %v634 = vadd.f32 %v252, %v633
      %v635 = vpop.f32.mrf.mxu0
      %v636 = vpop.f32.mrf.mxu0
      %v637 = vadd.f32 %v252, %v636
      %v638 = vpop.f32.mrf.mxu0
      %639 = vmatprep.mubr.bf16.mxu0 0
      %640 = vmatmul.mubr.bf16.gmra.mxu0 %v467
      %v641 = vpop.f32.mrf.mxu0
      %v642 = vadd.f32 %v252, %v641
      %v643 = vpop.f32.mrf.mxu0
      %v644 = vpop.f32.mrf.mxu0
      %v645 = vadd.f32 %v252, %v644
      %v646 = vpop.f32.mrf.mxu0
      %647 = vmatprep.mubr.bf16.mxu0 0
      %648 = vmatmul.mubr.bf16.gmra.mxu0 %v470
      %v649 = vpop.f32.mrf.mxu0
      %v650 = vadd.f32 %v252, %v649
      %v651 = vpop.f32.mrf.mxu0
      %v652 = vpop.f32.mrf.mxu0
      %v653 = vadd.f32 %v252, %v652
      %v654 = vpop.f32.mrf.mxu0
      %655 = vmatprep.mubr.bf16.mxu0 0
      %656 = vmatmul.mubr.bf16.gmra.mxu0 %v473
      %v657 = vpop.f32.mrf.mxu0
      %v658 = vadd.f32 %v252, %v657
      %v659 = vpop.f32.mrf.mxu0
      %v660 = vpop.f32.mrf.mxu0
      %v661 = vadd.f32 %v252, %v660
      %v662 = vpop.f32.mrf.mxu0
      %663 = vmatprep.mubr.bf16.mxu0 0
      %664 = vmatmul.mubr.bf16.gmra.mxu0 %v476
      %v665 = vpop.f32.mrf.mxu0
      %v666 = vadd.f32 %v252, %v665
      %v667 = vpop.f32.mrf.mxu0
      %v668 = vpop.f32.mrf.mxu0
      %v669 = vadd.f32 %v252, %v668
      %v670 = vpop.f32.mrf.mxu0
      %671 = vmatprep.mubr.bf16.mxu0 0
      %672 = vmatmul.mubr.bf16.gmra.mxu0 %v479
      %v673 = vpop.f32.mrf.mxu0
      %v674 = vadd.f32 %v252, %v673
      %v675 = vpop.f32.mrf.mxu0
      %v676 = vpop.f32.mrf.mxu0
      %v677 = vadd.f32 %v252, %v676
      %v678 = vpop.f32.mrf.mxu0
      %679 = vmatprep.mubr.bf16.mxu0 0
      %680 = vmatmul.mubr.bf16.gmra.mxu0 %v482
      %v681 = vpop.f32.mrf.mxu0
      %v682 = vadd.f32 %v252, %v681
      %v683 = vpop.f32.mrf.mxu0
      %v684 = vpop.f32.mrf.mxu0
      %v685 = vadd.f32 %v252, %v684
      %v686 = vpop.f32.mrf.mxu0
      %687 = vmatprep.mubr.bf16.mxu0 0
      %688 = vmatmul.mubr.bf16.gmra.mxu0 %v485
      %v689 = vpop.f32.mrf.mxu0
      %v690 = vadd.f32 %v252, %v689
      %v691 = vpop.f32.mrf.mxu0
      %v692 = vpop.f32.mrf.mxu0
      %v693 = vadd.f32 %v252, %v692
      %v694 = vpop.f32.mrf.mxu0
      %695 = vmatprep.mubr.bf16.mxu0 0
      %696 = vmatmul.mubr.bf16.gmra.mxu0 %v488
      %v697 = vpop.f32.mrf.mxu0
      %v698 = vadd.f32 %v252, %v697
      %v699 = vpop.f32.mrf.mxu0
      %v700 = vpop.f32.mrf.mxu0
      %v701 = vadd.f32 %v252, %v700
      %v702 = vpop.f32.mrf.mxu0
      %703 = vmatprep.mubr.bf16.mxu0 0
      %704 = vmatmul.mubr.bf16.gmra.mxu0 %v491
      %v705 = vpop.f32.mrf.mxu0
      %v706 = vadd.f32 %v252, %v705
      %v707 = vpop.f32.mrf.mxu0
      %v708 = vpop.f32.mrf.mxu0
      %v709 = vadd.f32 %v252, %v708
      %v710 = vpop.f32.mrf.mxu0
      %711 = vmatprep.mubr.bf16.mxu0 0
      %712 = vmatmul.mubr.bf16.gmra.mxu0 %v494
      %v713 = vpop.f32.mrf.mxu0
      %v714 = vadd.f32 %v252, %v713
      %v715 = vpop.f32.mrf.mxu0
      %v716 = vpop.f32.mrf.mxu0
      %v717 = vadd.f32 %v252, %v716
      %v718 = vpop.f32.mrf.mxu0
      %719 = vmatprep.mubr.bf16.mxu0 0
      %720 = vmatmul.mubr.bf16.gmra.mxu0 %v497
      %v721 = vpop.f32.mrf.mxu0
      %v722 = vadd.f32 %v252, %v721
      %v723 = vpop.f32.mrf.mxu0
      %v724 = vpop.f32.mrf.mxu0
      %v725 = vadd.f32 %v252, %v724
      %v726 = vpop.f32.mrf.mxu0
      %727 = vmatprep.mubr.bf16.mxu0 0
      %728 = vmatmul.mubr.bf16.gmra.mxu0 %v500
      %v729 = vpop.f32.mrf.mxu0
      %v730 = vadd.f32 %v252, %v729
      %v731 = vpop.f32.mrf.mxu0
      %v732 = vpop.f32.mrf.mxu0
      %v733 = vadd.f32 %v252, %v732
      %v734 = vpop.f32.mrf.mxu0
      %735 = vmatprep.mubr.bf16.mxu0 0
      %736 = vmatmul.mubr.bf16.gmra.mxu0 %v503
      %v737 = vpop.f32.mrf.mxu0
      %v738 = vadd.f32 %v252, %v737
      %v739 = vpop.f32.mrf.mxu0
      %v740 = vpop.f32.mrf.mxu0
      %v741 = vadd.f32 %v252, %v740
      %v742 = vpop.f32.mrf.mxu0
      %743 = vmatprep.mubr.bf16.mxu0 0
      %744 = vmatmul.mubr.bf16.gmra.mxu0 %v506
      %v745 = vpop.f32.mrf.mxu0
      %v746 = vadd.f32 %v252, %v745
      %v747 = vpop.f32.mrf.mxu0
      %v748 = vpop.f32.mrf.mxu0
      %v749 = vadd.f32 %v252, %v748
      %v750 = vpop.f32.mrf.mxu0
      %751 = vmatprep.mubr.bf16.mxu0 0
      %752 = vmatmul.mubr.bf16.gmra.mxu0 %v509
      %v753 = vpop.f32.mrf.mxu0
      %v754 = vadd.f32 %v252, %v753
      %v755 = vpop.f32.mrf.mxu0
      %v756 = vpop.f32.mrf.mxu0
      %v757 = vadd.f32 %v252, %v756
      %v758 = vpop.f32.mrf.mxu0
      %759 = vmatprep.mubr.bf16.mxu0 0
      %760 = vmatmul.mubr.bf16.gmra.mxu0 %v512
      %v761 = vpop.f32.mrf.mxu0
      %v762 = vadd.f32 %v252, %v761
      %v763 = vpop.f32.mrf.mxu0
      %v764 = vpop.f32.mrf.mxu0
      %v765 = vadd.f32 %v252, %v764
      %v766 = vpop.f32.mrf.mxu0
      %767 = vmatprep.mubr.bf16.mxu0 0
      %768 = vmatmul.mubr.bf16.gmra.mxu0 %v515
      %v769 = vpop.f32.mrf.mxu0
      %v770 = vadd.f32 %v252, %v769
      %v771 = vpop.f32.mrf.mxu0
      %v772 = vpop.f32.mrf.mxu0
      %v773 = vadd.f32 %v252, %v772
      %v774 = vpop.f32.mrf.mxu0
      %775 = vmatprep.mubr.bf16.mxu0 0
      %776 = vmatmul.mubr.bf16.gmra.mxu0 %v518
      %v777 = vpop.f32.mrf.mxu0
      %v778 = vadd.f32 %v252, %v777
      %v779 = vpop.f32.mrf.mxu0
      %v780 = vpop.f32.mrf.mxu0
      %v781 = vadd.f32 %v252, %v780
      %v782 = vpop.f32.mrf.mxu0
      %783 = vmatprep.mubr.bf16.mxu0 0
      %784 = vmatmul.mubr.bf16.gmra.mxu0 %v521
      %v785 = vpop.f32.mrf.mxu0
      %v786 = vadd.f32 %v252, %v785
      %v787 = vpop.f32.mrf.mxu0
      %v788 = vpop.f32.mrf.mxu0
      %v789 = vadd.f32 %v252, %v788
      %v790 = vpop.f32.mrf.mxu0
      %791 = vmatprep.mubr.bf16.mxu0 0
      %792 = vmatmul.mubr.bf16.gmra.mxu0 %v524
      %v793 = vpop.f32.mrf.mxu0
      %v794 = vadd.f32 %v252, %v793
      %v795 = vpop.f32.mrf.mxu0
      %v796 = vpop.f32.mrf.mxu0
      %v797 = vadd.f32 %v252, %v796
      %v798 = vpop.f32.mrf.mxu0
      %799 = vmatprep.mubr.bf16.mxu0 0
      %800 = vmatmul.mubr.bf16.gmra.mxu0 %v527
      %v801 = vpop.f32.mrf.mxu0
      %v802 = vadd.f32 %v252, %v801
      %v803 = vpop.f32.mrf.mxu0
      %v804 = vpop.f32.mrf.mxu0
      %v805 = vadd.f32 %v252, %v804
      %v806 = vpop.f32.mrf.mxu0
      %807 = vmatprep.mubr.bf16.mxu0 0
      %808 = vmatmul.mubr.bf16.gmra.mxu0 %v530
      %v809 = vpop.f32.mrf.mxu0
      %v810 = vadd.f32 %v252, %v809
      %v811 = vpop.f32.mrf.mxu0
      %v812 = vpop.f32.mrf.mxu0
      %v813 = vadd.f32 %v252, %v812
      %v814 = vpop.f32.mrf.mxu0
      %815 = vmatprep.mubr.bf16.mxu0 0
      %816 = vmatmul.mubr.bf16.gmra.mxu0 %v533
      %v817 = vpop.f32.mrf.mxu0
      %v818 = vadd.f32 %v252, %v817
      %v819 = vpop.f32.mrf.mxu0
      %v820 = vpop.f32.mrf.mxu0
      %v821 = vadd.f32 %v252, %v820
      %v822 = vpop.f32.mrf.mxu0
      %823 = vdwg.mxu0
      %v824 = vmax.f32 %v570, 0.0
      %v825 = vmax.f32 %v573, 0.0
      %v826 = vmax.f32 %v578, 0.0
      %v827 = vmax.f32 %v581, 0.0
      %v828 = vmax.f32 %v586, 0.0
      %v829 = vmax.f32 %v589, 0.0
      %v830 = vmax.f32 %v594, 0.0
      %v831 = vmax.f32 %v597, 0.0
      %v832 = vmax.f32 %v602, 0.0
      %v833 = vmax.f32 %v605, 0.0
      %v834 = vmax.f32 %v610, 0.0
      %v835 = vmax.f32 %v613, 0.0
      %v836 = vmax.f32 %v618, 0.0
      %v837 = vmax.f32 %v621, 0.0
      %v838 = vmax.f32 %v626, 0.0
      %v839 = vmax.f32 %v629, 0.0
      %v840 = vmax.f32 %v634, 0.0
      %v841 = vmax.f32 %v637, 0.0
      %v842 = vmax.f32 %v642, 0.0
      %v843 = vmax.f32 %v645, 0.0
      %v844 = vmax.f32 %v650, 0.0
      %v845 = vmax.f32 %v653, 0.0
      %v846 = vmax.f32 %v658, 0.0
      %v847 = vmax.f32 %v661, 0.0
      %v848 = vmax.f32 %v666, 0.0
      %v849 = vmax.f32 %v669, 0.0
      %v850 = vmax.f32 %v674, 0.0
      %v851 = vmax.f32 %v677, 0.0
      %v852 = vmax.f32 %v682, 0.0
      %v853 = vmax.f32 %v685, 0.0
      %v854 = vmax.f32 %v690, 0.0
      %v855 = vmax.f32 %v693, 0.0
      %v856 = vmax.f32 %v698, 0.0
      %v857 = vmax.f32 %v701, 0.0
      %v858 = vmax.f32 %v706, 0.0
      %v859 = vmax.f32 %v709, 0.0
      %v860 = vmax.f32 %v714, 0.0
      %v861 = vmax.f32 %v717, 0.0
      %v862 = vmax.f32 %v722, 0.0
      %v863 = vmax.f32 %v725, 0.0
      %v864 = vmax.f32 %v730, 0.0
      %v865 = vmax.f32 %v733, 0.0
      %v866 = vmax.f32 %v738, 0.0
      %v867 = vmax.f32 %v741, 0.0
      %v868 = vmax.f32 %v746, 0.0
      %v869 = vmax.f32 %v749, 0.0
      %v870 = vmax.f32 %v754, 0.0
      %v871 = vmax.f32 %v757, 0.0
      %v872 = vmax.f32 %v762, 0.0
      %v873 = vmax.f32 %v765, 0.0
      %v874 = vmax.f32 %v770, 0.0
      %v875 = vmax.f32 %v773, 0.0
      %v876 = vmax.f32 %v778, 0.0
      %v877 = vmax.f32 %v781, 0.0
      %v878 = vmax.f32 %v786, 0.0
      %v879 = vmax.f32 %v789, 0.0
      %v880 = vmax.f32 %v794, 0.0
      %v881 = vmax.f32 %v797, 0.0
      %v882 = vmax.f32 %v802, 0.0
      %v883 = vmax.f32 %v805, 0.0
      %v884 = vmax.f32 %v810, 0.0
      %v885 = vmax.f32 %v813, 0.0
      %v886 = vmax.f32 %v818, 0.0
      %v887 = vmax.f32 %v821, 0.0
      %v888 = vpack.c.bf16 %v825, %v824
      %v889 = vpack.c.bf16 %v827, %v826
      %v890 = vpack.c.bf16 %v829, %v828
      %v891 = vpack.c.bf16 %v831, %v830
      %v892 = vpack.c.bf16 %v833, %v832
      %v893 = vpack.c.bf16 %v835, %v834
      %v894 = vpack.c.bf16 %v837, %v836
      %v895 = vpack.c.bf16 %v839, %v838
      %v896 = vpack.c.bf16 %v841, %v840
      %v897 = vpack.c.bf16 %v843, %v842
      %v898 = vpack.c.bf16 %v845, %v844
      %v899 = vpack.c.bf16 %v847, %v846
      %v900 = vpack.c.bf16 %v849, %v848
      %v901 = vpack.c.bf16 %v851, %v850
      %v902 = vpack.c.bf16 %v853, %v852
      %v903 = vpack.c.bf16 %v855, %v854
      %v904 = vpack.c.bf16 %v857, %v856
      %v905 = vpack.c.bf16 %v859, %v858
      %v906 = vpack.c.bf16 %v861, %v860
      %v907 = vpack.c.bf16 %v863, %v862
      %v908 = vpack.c.bf16 %v865, %v864
      %v909 = vpack.c.bf16 %v867, %v866
      %v910 = vpack.c.bf16 %v869, %v868
      %v911 = vpack.c.bf16 %v871, %v870
      %v912 = vpack.c.bf16 %v873, %v872
      %v913 = vpack.c.bf16 %v875, %v874
      %v914 = vpack.c.bf16 %v877, %v876
      %v915 = vpack.c.bf16 %v879, %v878
      %v916 = vpack.c.bf16 %v881, %v880
      %v917 = vpack.c.bf16 %v883, %v882
      %v918 = vpack.c.bf16 %v885, %v884
      %v919 = vpack.c.bf16 %v887, %v886
      %v952 = vunpack.c.l.b16 %v888
      %v953 = vunpack.c.h.b16 %v888
      %v954 = vunpack.c.l.b16 %v889
      %v955 = vunpack.c.h.b16 %v889
      %v956 = vunpack.c.l.b16 %v890
      %v957 = vunpack.c.h.b16 %v890
      %v958 = vunpack.c.l.b16 %v891
      %v959 = vunpack.c.h.b16 %v891
      %v960 = vunpack.c.l.b16 %v892
      %v961 = vunpack.c.h.b16 %v892
      %v962 = vunpack.c.l.b16 %v893
      %v963 = vunpack.c.h.b16 %v893
      %v964 = vunpack.c.l.b16 %v894
      %v965 = vunpack.c.h.b16 %v894
      %v966 = vunpack.c.l.b16 %v895
      %v967 = vunpack.c.h.b16 %v895
      %v968 = vunpack.c.l.b16 %v896
      %v969 = vunpack.c.h.b16 %v896
      %v970 = vunpack.c.l.b16 %v897
      %v971 = vunpack.c.h.b16 %v897
      %v972 = vunpack.c.l.b16 %v898
      %v973 = vunpack.c.h.b16 %v898
      %v974 = vunpack.c.l.b16 %v899
      %v975 = vunpack.c.h.b16 %v899
      %v976 = vunpack.c.l.b16 %v900
      %v977 = vunpack.c.h.b16 %v900
      %v978 = vunpack.c.l.b16 %v901
      %v979 = vunpack.c.h.b16 %v901
      %v980 = vunpack.c.l.b16 %v902
      %v981 = vunpack.c.h.b16 %v902
      %v982 = vunpack.c.l.b16 %v903
      %v983 = vunpack.c.h.b16 %v903
      %v984 = vunpack.c.l.b16 %v904
      %v985 = vunpack.c.h.b16 %v904
      %v986 = vunpack.c.l.b16 %v905
      %v987 = vunpack.c.h.b16 %v905
      %v988 = vunpack.c.l.b16 %v906
      %v989 = vunpack.c.h.b16 %v906
      %v990 = vunpack.c.l.b16 %v907
      %v991 = vunpack.c.h.b16 %v907
      %v992 = vunpack.c.l.b16 %v908
      %v993 = vunpack.c.h.b16 %v908
      %v994 = vunpack.c.l.b16 %v909
      %v995 = vunpack.c.h.b16 %v909
      %v996 = vunpack.c.l.b16 %v910
      %v997 = vunpack.c.h.b16 %v910
      %v998 = vunpack.c.l.b16 %v911
      %v999 = vunpack.c.h.b16 %v911
      %v1000 = vunpack.c.l.b16 %v912
      %v1001 = vunpack.c.h.b16 %v912
      %v1002 = vunpack.c.l.b16 %v913
      %v1003 = vunpack.c.h.b16 %v913
      %v1004 = vunpack.c.l.b16 %v914
      %v1005 = vunpack.c.h.b16 %v914
      %v1006 = vunpack.c.l.b16 %v915
      %v1007 = vunpack.c.h.b16 %v915
      %v1008 = vunpack.c.l.b16 %v916
      %v1009 = vunpack.c.h.b16 %v916
      %v1010 = vunpack.c.l.b16 %v917
      %v1011 = vunpack.c.h.b16 %v917
      %v1012 = vunpack.c.l.b16 %v918
      %v1013 = vunpack.c.h.b16 %v918
      %v1014 = vunpack.c.l.b16 %v919
      %v1015 = vunpack.c.h.b16 %v919
      %v1016 = vpack.c.b16 %v952, %v952
      %v1017 = vpack.c.b16 %v953, %v953
      %v1018 = vpack.c.b16 %v954, %v954
      %v1019 = vpack.c.b16 %v955, %v955
      %v1020 = vpack.c.b16 %v956, %v956
      %v1021 = vpack.c.b16 %v957, %v957
      %v1022 = vpack.c.b16 %v958, %v958
      %v1023 = vpack.c.b16 %v959, %v959
      %v1024 = vpack.c.b16 %v960, %v960
      %v1025 = vpack.c.b16 %v961, %v961
      %v1026 = vpack.c.b16 %v962, %v962
      %v1027 = vpack.c.b16 %v963, %v963
      %v1028 = vpack.c.b16 %v964, %v964
      %v1029 = vpack.c.b16 %v965, %v965
      %v1030 = vpack.c.b16 %v966, %v966
      %v1031 = vpack.c.b16 %v967, %v967
      %v1032 = vpack.c.b16 %v968, %v968
      %v1033 = vpack.c.b16 %v969, %v969
      %v1034 = vpack.c.b16 %v970, %v970
      %v1035 = vpack.c.b16 %v971, %v971
      %v1036 = vpack.c.b16 %v972, %v972
      %v1037 = vpack.c.b16 %v973, %v973
      %v1038 = vpack.c.b16 %v974, %v974
      %v1039 = vpack.c.b16 %v975, %v975
      %v1040 = vpack.c.b16 %v976, %v976
      %v1041 = vpack.c.b16 %v977, %v977
      %v1042 = vpack.c.b16 %v978, %v978
      %v1043 = vpack.c.b16 %v979, %v979
      %v1044 = vpack.c.b16 %v980, %v980
      %v1045 = vpack.c.b16 %v981, %v981
      %v1046 = vpack.c.b16 %v982, %v982
      %v1047 = vpack.c.b16 %v983, %v983
      %v1048 = vpack.c.b16 %v984, %v984
      %v1049 = vpack.c.b16 %v985, %v985
      %v1050 = vpack.c.b16 %v986, %v986
      %v1051 = vpack.c.b16 %v987, %v987
      %v1052 = vpack.c.b16 %v988, %v988
      %v1053 = vpack.c.b16 %v989, %v989
      %v1054 = vpack.c.b16 %v990, %v990
      %v1055 = vpack.c.b16 %v991, %v991
      %v1056 = vpack.c.b16 %v992, %v992
      %v1057 = vpack.c.b16 %v993, %v993
      %v1058 = vpack.c.b16 %v994, %v994
      %v1059 = vpack.c.b16 %v995, %v995
      %v1060 = vpack.c.b16 %v996, %v996
      %v1061 = vpack.c.b16 %v997, %v997
      %v1062 = vpack.c.b16 %v998, %v998
      %v1063 = vpack.c.b16 %v999, %v999
      %v1064 = vpack.c.b16 %v1000, %v1000
      %v1065 = vpack.c.b16 %v1001, %v1001
      %v1066 = vpack.c.b16 %v1002, %v1002
      %v1067 = vpack.c.b16 %v1003, %v1003
      %v1068 = vpack.c.b16 %v1004, %v1004
      %v1069 = vpack.c.b16 %v1005, %v1005
      %v1070 = vpack.c.b16 %v1006, %v1006
      %v1071 = vpack.c.b16 %v1007, %v1007
      %v1072 = vpack.c.b16 %v1008, %v1008
      %v1073 = vpack.c.b16 %v1009, %v1009
      %v1074 = vpack.c.b16 %v1010, %v1010
      %v1075 = vpack.c.b16 %v1011, %v1011
      %v1076 = vpack.c.b16 %v1012, %v1012
      %v1077 = vpack.c.b16 %v1013, %v1013
      %v1078 = vpack.c.b16 %v1014, %v1014
      %v1079 = vpack.c.b16 %v1015, %v1015
      %vm1144 = vcmask 257024
      %1145 = vst.msk [vmem:[%s172] sm:$0xf] %vm1144, %v1016
      %1146 = vst.msk [vmem:[%s172 + $0x4] sm:$0xf] %vm1144, %v1017
      %1147 = vst.msk [vmem:[%s172 + $0x8] sm:$0xf] %vm1144, %v1018
      %1148 = vst.msk [vmem:[%s172 + $0xc] sm:$0xf] %vm1144, %v1019
      %1149 = vst.msk [vmem:[%s172 + $0x10] sm:$0xf] %vm1144, %v1020
      %1150 = vst.msk [vmem:[%s172 + $0x14] sm:$0xf] %vm1144, %v1021
      %1151 = vst.msk [vmem:[%s172 + $0x18] sm:$0xf] %vm1144, %v1022
      %1152 = vst.msk [vmem:[%s172 + $0x1c] sm:$0xf] %vm1144, %v1023
      %1153 = vst.msk [vmem:[%s172 + $0x20] sm:$0xf] %vm1144, %v1024
      %1154 = vst.msk [vmem:[%s172 + $0x24] sm:$0xf] %vm1144, %v1025
      %1155 = vst.msk [vmem:[%s172 + $0x28] sm:$0xf] %vm1144, %v1026
      %1156 = vst.msk [vmem:[%s172 + $0x2c] sm:$0xf] %vm1144, %v1027
      %1157 = vst.msk [vmem:[%s172 + $0x30] sm:$0xf] %vm1144, %v1028
      %1158 = vst.msk [vmem:[%s172 + $0x34] sm:$0xf] %vm1144, %v1029
      %1159 = vst.msk [vmem:[%s172 + $0x38] sm:$0xf] %vm1144, %v1030
      %1160 = vst.msk [vmem:[%s172 + $0x3c] sm:$0xf] %vm1144, %v1031
      %1161 = vst.msk [vmem:[%s172 + $0x40] sm:$0xf] %vm1144, %v1032
      %1162 = vst.msk [vmem:[%s172 + $0x44] sm:$0xf] %vm1144, %v1033
      %1163 = vst.msk [vmem:[%s172 + $0x48] sm:$0xf] %vm1144, %v1034
      %1164 = vst.msk [vmem:[%s172 + $0x4c] sm:$0xf] %vm1144, %v1035
      %1165 = vst.msk [vmem:[%s172 + $0x50] sm:$0xf] %vm1144, %v1036
      %1166 = vst.msk [vmem:[%s172 + $0x54] sm:$0xf] %vm1144, %v1037
      %1167 = vst.msk [vmem:[%s172 + $0x58] sm:$0xf] %vm1144, %v1038
      %1168 = vst.msk [vmem:[%s172 + $0x5c] sm:$0xf] %vm1144, %v1039
      %1169 = vst.msk [vmem:[%s172 + $0x60] sm:$0xf] %vm1144, %v1040
      %1170 = vst.msk [vmem:[%s172 + $0x64] sm:$0xf] %vm1144, %v1041
      %1171 = vst.msk [vmem:[%s172 + $0x68] sm:$0xf] %vm1144, %v1042
      %1172 = vst.msk [vmem:[%s172 + $0x6c] sm:$0xf] %vm1144, %v1043
      %1173 = vst.msk [vmem:[%s172 + $0x70] sm:$0xf] %vm1144, %v1044
      %1174 = vst.msk [vmem:[%s172 + $0x74] sm:$0xf] %vm1144, %v1045
      %1175 = vst.msk [vmem:[%s172 + $0x78] sm:$0xf] %vm1144, %v1046
      %1176 = vst.msk [vmem:[%s172 + $0x7c] sm:$0xf] %vm1144, %v1047
      %1177 = vst.msk [vmem:[%s172 + $0x80] sm:$0xf] %vm1144, %v1048
      %1178 = vst.msk [vmem:[%s172 + $0x84] sm:$0xf] %vm1144, %v1049
      %1179 = vst.msk [vmem:[%s172 + $0x88] sm:$0xf] %vm1144, %v1050
      %1180 = vst.msk [vmem:[%s172 + $0x8c] sm:$0xf] %vm1144, %v1051
      %1181 = vst.msk [vmem:[%s172 + $0x90] sm:$0xf] %vm1144, %v1052
      %1182 = vst.msk [vmem:[%s172 + $0x94] sm:$0xf] %vm1144, %v1053
      %1183 = vst.msk [vmem:[%s172 + $0x98] sm:$0xf] %vm1144, %v1054
      %1184 = vst.msk [vmem:[%s172 + $0x9c] sm:$0xf] %vm1144, %v1055
      %1185 = vst.msk [vmem:[%s172 + $0xa0] sm:$0xf] %vm1144, %v1056
      %1186 = vst.msk [vmem:[%s172 + $0xa4] sm:$0xf] %vm1144, %v1057
      %1187 = vst.msk [vmem:[%s172 + $0xa8] sm:$0xf] %vm1144, %v1058
      %1188 = vst.msk [vmem:[%s172 + $0xac] sm:$0xf] %vm1144, %v1059
      %1189 = vst.msk [vmem:[%s172 + $0xb0] sm:$0xf] %vm1144, %v1060
      %1190 = vst.msk [vmem:[%s172 + $0xb4] sm:$0xf] %vm1144, %v1061
      %1191 = vst.msk [vmem:[%s172 + $0xb8] sm:$0xf] %vm1144, %v1062
      %1192 = vst.msk [vmem:[%s172 + $0xbc] sm:$0xf] %vm1144, %v1063
      %1193 = vst.msk [vmem:[%s172 + $0xc0] sm:$0xf] %vm1144, %v1064
      %1194 = vst.msk [vmem:[%s172 + $0xc4] sm:$0xf] %vm1144, %v1065
      %1195 = vst.msk [vmem:[%s172 + $0xc8] sm:$0xf] %vm1144, %v1066
      %1196 = vst.msk [vmem:[%s172 + $0xcc] sm:$0xf] %vm1144, %v1067
      %1197 = vst.msk [vmem:[%s172 + $0xd0] sm:$0xf] %vm1144, %v1068
      %1198 = vst.msk [vmem:[%s172 + $0xd4] sm:$0xf] %vm1144, %v1069
      %1199 = vst.msk [vmem:[%s172 + $0xd8] sm:$0xf] %vm1144, %v1070
      %1200 = vst.msk [vmem:[%s172 + $0xdc] sm:$0xf] %vm1144, %v1071
      %1201 = vst.msk [vmem:[%s172 + $0xe0] sm:$0xf] %vm1144, %v1072
      %1202 = vst.msk [vmem:[%s172 + $0xe4] sm:$0xf] %vm1144, %v1073
      %1203 = vst.msk [vmem:[%s172 + $0xe8] sm:$0xf] %vm1144, %v1074
      %1204 = vst.msk [vmem:[%s172 + $0xec] sm:$0xf] %vm1144, %v1075
      %1205 = vst.msk [vmem:[%s172 + $0xf0] sm:$0xf] %vm1144, %v1076
      %1206 = vst.msk [vmem:[%s172 + $0xf4] sm:$0xf] %vm1144, %v1077
      %1207 = vst.msk [vmem:[%s172 + $0xf8] sm:$0xf] %vm1144, %v1078
      %1208 = vst.msk [vmem:[%s172 + $0xfc] sm:$0xf] %vm1144, %v1079
      %s1209 = smul.u32 64, %s14
      %p1210 = scmp.lt.s32.totalorder %s1209, 127
      %s1211 = scalar_select %p1210, %s1209, 127
      %s1212 = smul.addr %s1211, 4
      %s1213 = scalar_lea.vmem %s3, %s1212
      // Predicated region
      $region33: #{tpu_custom_call.1} parent=31 // pred_check
        %p1214 = pneg %p100
      $region34: #{tpu_custom_call.1} parent=31 // pred_check_branch
        %1216 = sbr.rel (%p1214) target = $region36
      $region35: #{tpu_custom_call.1} parent=31 // pred_region
        %s1217 = smul.u32 64, %s14
      $region36: #{tpu_custom_call.1} parent=31 // pred_fallthru
        _
    $region32: #{tpu_custom_call.1} parent=5 // pred_fallthru
      _
    %p1218 = scmp.le.s32.totalorder 2, %s9
    // Predicated region
    $region37: #{tpu_custom_call.1} parent=5 // pred_check
      %p1219 = pneg %p1218
    $region38: #{tpu_custom_call.1} parent=5 // pred_check_branch
      %1221 = sbr.rel (%p1219) target = $region40
    $region39: #{tpu_custom_call.1} parent=5 // pred_region
      %s1222 = ssub.s32 %s9, 2
      // Predicated region
      $region41: #{tpu_custom_call.1} parent=39 // pred_check
        %p1223 = pneg %p106
      $region42: #{tpu_custom_call.1} parent=39 // pred_check_branch
        %1225 = sbr.rel (%p1223) target = $region44
      $region43: #{tpu_custom_call.1} parent=39 // pred_region
        %s1226 = smul.u32 64, %s15
        %p1227 = scmp.lt.s32.totalorder %s1226, 127
        %s1228 = scalar_select %p1227, %s1226, 127
        %s1229 = smul.addr %s1228, 4
        %s1230 = scalar_lea.vmem %s3, %s1229
      $region44: #{tpu_custom_call.1} parent=39 // pred_fallthru
        _
    $region40: #{tpu_custom_call.1} parent=5 // pred_fallthru
      _
  $region6: #{tpu_custom_call.1} parent=0 // loop_footer
    %s13 = sadd.s32 1, %s9
  $region7: #{tpu_custom_call.1} parent=0 // loop_footer_branch
    %8 = sbr.rel target = $region3
  $region8: #{tpu_custom_call.1} parent=0 // loop_exit
    _

</llo_original>
